<compile_context>
chip_gen: v5e
topology: v5e:2x2
jax: 0.10.0
libtpu: 0.0.40
codegen_flags: <defaults>
</compile_context>

<pallas_src>
import functools

import jax
import jax.numpy as jnp
from jax.experimental import pallas as pl
from jax.experimental.pallas import tpu as pltpu

EPS = 1e-5


def residual_block_kernel(x_ref, w1_ref, g1_ref, be1_ref,
                          w2_ref, g2_ref, be2_ref,
                          ws_ref, gs_ref, bes_ref,
                          o_ref, im1_scr,
                          *, N, L, K, P, C_in, C_out, has_projection):
    NL = N * L
    inv_n = 1.0 / float(NL)
    mdt = im1_scr.dtype                      # MXU input dtype (bf16 or f32)

    # Per-lane position inside each length-L sequence (computed once, lane-dense).
    pos = jax.lax.broadcasted_iota(jnp.int32, (1, NL), 1) % L

    def tap(slab, k):
        # Tap k of a stride-1 'same' conv on a (C, N*L) slab: source element sits at
        # lane j + (k - P); roll moves it into place (XLU slot, not vector-store),
        # the mask zeros positions where the tap crosses the padding edge or a batch
        # boundary (so no scratch memset / jnp.pad is needed anywhere).
        if k == P:
            return slab
        rolled = pltpu.roll(slab, shift=(P - k) % NL, axis=1)
        src = pos + (k - P)
        valid = (src >= 0) & (src < L)
        return jnp.where(valid, rolled, jnp.zeros_like(rolled))

    def bn_scale_shift(y, gamma, beta):
        # Training-mode BatchNorm1d as a per-channel scale+shift.
        # Two-pass (shifted) variance: avoids E[y^2]-E[y]^2 cancellation.
        m = jnp.sum(y, axis=1, keepdims=True) * inv_n
        d = y - m
        v = jnp.sum(d * d, axis=1, keepdims=True) * inv_n
        a = gamma * jax.lax.rsqrt(v + EPS)
        return a, beta - m * a

    x = x_ref[...]                                           # (C_in, NL) in mdt

    # ---- conv1: deep-contraction im2col (K*C_in), built with K lane-dense,
    #      full-width tap stores (no partial/masked stores, no memset). ----
    for k in range(K):
        im1_scr[k * C_in:(k + 1) * C_in, :] = tap(x, k)
    out1 = jnp.dot(w1_ref[...], im1_scr[...],
                   preferred_element_type=jnp.float32)       # (C_out, NL) f32
    a1, c1 = bn_scale_shift(out1, g1_ref[...], be1_ref[...])
    y1 = jnp.maximum(out1 * a1 + c1, 0.0).astype(mdt)        # cast to MXU dtype once

    # ---- conv2: K per-tap accumulated matmuls; no (K*C_out, NL) im2col scratch,
    #      no 9x write amplification of y1. ----
    out2 = jnp.zeros((C_out, NL), jnp.float32)
    for k in range(K):
        out2 = out2 + jnp.dot(w2_ref[k], tap(y1, k),
                              preferred_element_type=jnp.float32)
    a2, c2 = bn_scale_shift(out2, g2_ref[...], be2_ref[...])

    # ---- shortcut: 1x1 conv + BN straight from the resident x slab,
    #      or identity when in_channels == out_channels. ----
    if has_projection:
        res = jnp.dot(ws_ref[...], x, preferred_element_type=jnp.float32)
        ar, cr = bn_scale_shift(res, gs_ref[...], bes_ref[...])
        res_term = res * ar
        shift = c2 + cr
    else:
        # NOTE: in the bf16 path the identity residual is x quantized to bf16.
        res_term = x.astype(jnp.float32)
        shift = c2

    # ---- fused bn2 + shortcut + residual add + ReLU; one lane-dense store. ----
    o_ref[...] = jnp.maximum(out2 * a2 + res_term + shift, 0.0).astype(o_ref.dtype)


def residual_block(x_ncl, params, kernel_size=9, padding=4,
                   matmul_dtype=jnp.bfloat16):
    """x_ncl: (N, C_in, L) float32 (PyTorch NCL layout).  Returns (N, C_out, L) f32."""
    N, C_in, L = x_ncl.shape
    C_out = params["w1"].shape[0]
    K, P = kernel_size, padding
    NL = N * L
    has_projection = "ws" in params
    if not has_projection:
        assert C_in == C_out, "identity shortcut requires in_channels == out_channels"
    itm = jnp.dtype(matmul_dtype).itemsize

    # Monolithic (grid=()) kernel: guard the VMEM footprint so we fail loudly rather
    # than spill / OOM (64 MiB physical VMEM per TensorCore on v7x).
    est = ((K + 2) * C_in * NL * itm         # x slab + conv1 im2col scratch (+slack)
           + 6 * C_out * NL * 4)             # f32 intermediates + output slab
    budget = est * 2 + (4 << 20)             # 2x headroom for compiler temps
    assert budget <= (64 << 20), (
        "ResidualBlock footprint too large for the monolithic kernel; "
        "TODO(synk): use the tiled multi-phase pipeline for this size.")
    vmem_limit = int(min(64 << 20, max(budget, 16 << 20)))

    # Wrapper-side layout plumbing (done once): channels on sublanes, flattened
    # (N*L) on lanes, so all kernel passes and the output store are lane-dense.
    x_slab = jnp.transpose(x_ncl, (1, 0, 2)).reshape(C_in, NL).astype(matmul_dtype)

    # conv1 weight (C_out, C_in, K) -> (C_out, K*C_in) matching im2col rows
    # (k*C_in + c); conv2 weight as per-tap matrices (K, C_out, C_out).
    w1f = jnp.transpose(params["w1"], (0, 2, 1)).reshape(C_out, K * C_in)
    w2t = jnp.transpose(params["w2"], (2, 0, 1))
    w1f = w1f.astype(matmul_dtype)
    w2t = w2t.astype(matmul_dtype)
    if has_projection:
        wsf = params["ws"][:, :, 0].astype(matmul_dtype)
        gs, bes = params["gs"], params["bes"]
    else:
        wsf = jnp.zeros((C_out, C_in), matmul_dtype)          # unused (static branch)
        gs = jnp.zeros((C_out,), jnp.float32)
        bes = jnp.zeros((C_out,), jnp.float32)
    col = lambda v: v.reshape(-1, 1).astype(jnp.float32)

    # NOTE: conv biases b1/b2/bs are intentionally NOT passed: a per-channel constant
    # added before a *training-mode* BatchNorm is exactly cancelled by the batch-mean
    # subtraction.  This is NOT valid for eval-mode (running-stat) BN.

    kern = functools.partial(residual_block_kernel, N=N, L=L, K=K, P=P,
                             C_in=C_in, C_out=C_out, has_projection=has_projection)
    vmem = pl.BlockSpec(memory_space=pltpu.MemorySpace.VMEM)
    out_slab = pl.pallas_call(
        kern,
        out_shape=jax.ShapeDtypeStruct((C_out, NL), jnp.float32),
        in_specs=[vmem] * 10,
        out_specs=vmem,
        scratch_shapes=[pltpu.VMEM((K * C_in, NL), matmul_dtype)],   # conv1 im2col
        compiler_params=pltpu.CompilerParams(vmem_limit_bytes=vmem_limit),
    )(x_slab,
      w1f, col(params["g1"]), col(params["be1"]),
      w2t, col(params["g2"]), col(params["be2"]),
      wsf, col(gs), col(bes))

    # Back to PyTorch NCL layout (wrapper-side plumbing).
    return jnp.transpose(out_slab.reshape(C_out, N, L), (1, 0, 2))


def residual_block_ref(x_ncl, params, K=9, P=4):
    """Pure-JAX reference matching the PyTorch forward (training-mode BN, with biases)."""
    def conv1d(x, w, b, pad):
        y = jax.lax.conv_general_dilated(
            x, w, window_strides=(1,), padding=[(pad, pad)],
            dimension_numbers=("NCH", "OIH", "NCH"))
        return y + b[None, :, None]

    def bn(x, g, be):
        m = jnp.mean(x, axis=(0, 2), keepdims=True)
        v = jnp.mean((x - m) ** 2, axis=(0, 2), keepdims=True)
        return (x - m) / jnp.sqrt(v + EPS) * g[None, :, None] + be[None, :, None]

    if "ws" in params:
        res = bn(conv1d(x_ncl, params["ws"], params["bs"], 0),
                 params["gs"], params["bes"])
    else:
        res = x_ncl
    out = jax.nn.relu(bn(conv1d(x_ncl, params["w1"], params["b1"], P),
                         params["g1"], params["be1"]))
    out = bn(conv1d(out, params["w2"], params["b2"], P), params["g2"], params["be2"])
    return jax.nn.relu(out + res)


def make_params(key, c_in, c_out, k):
    keys = jax.random.split(key, 13)
    u = lambda kk, shape, s: (jax.random.uniform(kk, shape, jnp.float32) - 0.5) * 2 * s
    p = {
        "w1": u(keys[0], (c_out, c_in, k), 0.3),
        "b1": u(keys[1], (c_out,), 0.3),
        "g1": 1.0 + u(keys[2], (c_out,), 0.1),
        "be1": u(keys[3], (c_out,), 0.1),
        "w2": u(keys[4], (c_out, c_out, k), 0.3),
        "b2": u(keys[5], (c_out,), 0.3),
        "g2": 1.0 + u(keys[6], (c_out,), 0.1),
        "be2": u(keys[7], (c_out,), 0.1),
    }
    if c_in != c_out:   # projection shortcut, as in the PyTorch module
        p.update({
            "ws": u(keys[8], (c_out, c_in, 1), 0.3),
            "bs": u(keys[9], (c_out,), 0.3),
            "gs": 1.0 + u(keys[10], (c_out,), 0.1),
            "bes": u(keys[11], (c_out,), 0.1),
        })
    return p


if __name__ == "__main__":
    N, C_IN, C_OUT, L, K, P = 2, 4, 8, 16, 9, 4
    key = jax.random.PRNGKey(0)
    kx, kp, kx2, kp2 = jax.random.split(key, 4)

    # --- Projection-shortcut case (in_channels != out_channels). ---
    x = jax.random.normal(kx, (N, C_IN, L), jnp.float32)       # PyTorch NCL input
    params = make_params(kp, C_IN, C_OUT, K)
    ref = jax.block_until_ready(residual_block_ref(x, params, K, P))

    # Algorithm check with f32 MXU inputs (tight tolerance).
    out_f32 = jax.block_until_ready(
        residual_block(x, params, K, P, matmul_dtype=jnp.float32))
    assert out_f32.shape == (N, C_OUT, L), out_f32.shape
    assert jnp.allclose(out_f32, ref, atol=2e-3, rtol=2e-3), \
        float(jnp.max(jnp.abs(out_f32 - ref)))

    # Default fast path: bf16 MXU inputs, f32 accumulation + f32 BN math.
    out = jax.block_until_ready(residual_block(x, params, K, P))
    assert out.shape == (N, C_OUT, L), out.shape
    assert jnp.allclose(out, ref, atol=7.5e-2, rtol=7.5e-2), \
        float(jnp.max(jnp.abs(out - ref)))

    # --- Identity-shortcut case (in_channels == out_channels). ---
    x2 = jax.random.normal(kx2, (N, C_OUT, L), jnp.float32)
    params2 = make_params(kp2, C_OUT, C_OUT, K)
    ref2 = jax.block_until_ready(residual_block_ref(x2, params2, K, P))
    out2 = jax.block_until_ready(
        residual_block(x2, params2, K, P, matmul_dtype=jnp.float32))
    assert out2.shape == (N, C_OUT, L), out2.shape
    assert jnp.allclose(out2, ref2, atol=2e-3, rtol=2e-3), \
        float(jnp.max(jnp.abs(out2 - ref2)))

    print("KERNEL_OK")
</pallas_src>

<mosaic_0001>
module attributes {stable_mosaic.version = 11 : i64} {
  func.func @residual_block_kernel(%arg0: memref<4x32xf32, #tpu.memory_space<vmem>>, %arg1: memref<8x36xf32, #tpu.memory_space<vmem>>, %arg2: memref<8x1xf32, #tpu.memory_space<vmem>>, %arg3: memref<8x1xf32, #tpu.memory_space<vmem>>, %arg4: memref<9x8x8xf32, #tpu.memory_space<vmem>>, %arg5: memref<8x1xf32, #tpu.memory_space<vmem>>, %arg6: memref<8x1xf32, #tpu.memory_space<vmem>>, %arg7: memref<8x4xf32, #tpu.memory_space<vmem>>, %arg8: memref<8x1xf32, #tpu.memory_space<vmem>>, %arg9: memref<8x1xf32, #tpu.memory_space<vmem>>, %arg10: memref<8x32xf32, #tpu.memory_space<vmem>>, %arg11: memref<36x32xf32, #tpu.memory_space<vmem>>) attributes {dimension_semantics = [], scalar_prefetch = 0 : i64, scratch_operands = 1 : i64, tpu.core_type = #tpu.core_type<tc>} {
    %0 = tpu.iota {dimensions = array<i32: 1>} : vector<1x32xi32>
    %c16_i32 = arith.constant 16 : i32
    %c0_i32 = arith.constant 0 : i32
    %1 = arith.cmpi eq, %c16_i32, %c0_i32 : i32
    %c1_i32 = arith.constant 1 : i32
    %2 = arith.select %1, %c1_i32, %c16_i32 : i32
    %3 = vector.broadcast %2 : i32 to vector<1x32xi32>
    %4 = arith.remsi %0, %3 : vector<1x32xi32>
    %c0_i32_0 = arith.constant 0 : i32
    %5 = vector.broadcast %c0_i32_0 : i32 to vector<1x32xi32>
    %6 = arith.cmpi ne, %4, %5 : vector<1x32xi32>
    %c0_i32_1 = arith.constant 0 : i32
    %7 = vector.broadcast %c0_i32_1 : i32 to vector<1x32xi32>
    %8 = arith.cmpi slt, %4, %7 : vector<1x32xi32>
    %c0_i32_2 = arith.constant 0 : i32
    %9 = arith.cmpi slt, %2, %c0_i32_2 : i32
    %10 = vector.broadcast %9 : i1 to vector<1x32xi1>
    %11 = vector.broadcast %10 : vector<1x32xi1> to vector<1x32xi1>
    %12 = arith.xori %8, %11 : vector<1x32xi1>
    %13 = arith.andi %12, %6 : vector<1x32xi1>
    %14 = vector.broadcast %2 : i32 to vector<1x32xi32>
    %15 = arith.addi %4, %14 : vector<1x32xi32>
    %16 = arith.select %13, %15, %4 : vector<1x32xi1>, vector<1x32xi32>
    %c0 = arith.constant 0 : index
    %c0_3 = arith.constant 0 : index
    %17 = vector.load %arg0[%c0, %c0_3] : memref<4x32xf32, #tpu.memory_space<vmem>>, vector<4x32xf32>
    %c4_i32 = arith.constant 4 : i32
    %18 = tpu.dynamic_rotate %17 by %c4_i32 dim 1 : vector<4x32xf32>, i32 -> vector<4x32xf32>
    %c-4_i32 = arith.constant -4 : i32
    %19 = vector.broadcast %c-4_i32 : i32 to vector<1x32xi32>
    %20 = arith.addi %16, %19 : vector<1x32xi32>
    %c0_i32_4 = arith.constant 0 : i32
    %21 = vector.broadcast %c0_i32_4 : i32 to vector<1x32xi32>
    %22 = arith.cmpi sge, %20, %21 : vector<1x32xi32>
    %c16_i32_5 = arith.constant 16 : i32
    %23 = vector.broadcast %c16_i32_5 : i32 to vector<1x32xi32>
    %24 = arith.cmpi slt, %20, %23 : vector<1x32xi32>
    %25 = arith.andi %22, %24 : vector<1x32xi1>
    %cst = arith.constant 0.000000e+00 : f32
    %26 = vector.broadcast %cst : f32 to vector<4x32xf32>
    %27 = vector.shape_cast %25 : vector<1x32xi1> to vector<1x32xi1>
    %28 = vector.broadcast %27 : vector<1x32xi1> to vector<4x32xi1>
    %29 = arith.select %28, %18, %26 : vector<4x32xi1>, vector<4x32xf32>
    %c0_6 = arith.constant 0 : index
    %c0_7 = arith.constant 0 : index
    %30 = vector.load %arg11[%c0_6, %c0_7] : memref<36x32xf32, #tpu.memory_space<vmem>>, vector<4x32xf32>
    tpu.vector_store %arg11[%c0_6, %c0_7], %29 {strides = array<i32>} : memref<36x32xf32, #tpu.memory_space<vmem>>, vector<4x32xf32>,
    %c3_i32 = arith.constant 3 : i32
    %31 = tpu.dynamic_rotate %17 by %c3_i32 dim 1 : vector<4x32xf32>, i32 -> vector<4x32xf32>
    %c-3_i32 = arith.constant -3 : i32
    %32 = vector.broadcast %c-3_i32 : i32 to vector<1x32xi32>
    %33 = arith.addi %16, %32 : vector<1x32xi32>
    %c0_i32_8 = arith.constant 0 : i32
    %34 = vector.broadcast %c0_i32_8 : i32 to vector<1x32xi32>
    %35 = arith.cmpi sge, %33, %34 : vector<1x32xi32>
    %c16_i32_9 = arith.constant 16 : i32
    %36 = vector.broadcast %c16_i32_9 : i32 to vector<1x32xi32>
    %37 = arith.cmpi slt, %33, %36 : vector<1x32xi32>
    %38 = arith.andi %35, %37 : vector<1x32xi1>
    %cst_10 = arith.constant 0.000000e+00 : f32
    %39 = vector.broadcast %cst_10 : f32 to vector<4x32xf32>
    %40 = vector.shape_cast %38 : vector<1x32xi1> to vector<1x32xi1>
    %41 = vector.broadcast %40 : vector<1x32xi1> to vector<4x32xi1>
    %42 = arith.select %41, %31, %39 : vector<4x32xi1>, vector<4x32xf32>
    %c4 = arith.constant 4 : index
    %c0_11 = arith.constant 0 : index
    %43 = vector.load %arg11[%c4, %c0_11] : memref<36x32xf32, #tpu.memory_space<vmem>>, vector<4x32xf32>
    tpu.vector_store %arg11[%c4, %c0_11], %42 {strides = array<i32>} : memref<36x32xf32, #tpu.memory_space<vmem>>, vector<4x32xf32>,
    %c2_i32 = arith.constant 2 : i32
    %44 = tpu.dynamic_rotate %17 by %c2_i32 dim 1 : vector<4x32xf32>, i32 -> vector<4x32xf32>
    %c-2_i32 = arith.constant -2 : i32
    %45 = vector.broadcast %c-2_i32 : i32 to vector<1x32xi32>
    %46 = arith.addi %16, %45 : vector<1x32xi32>
    %c0_i32_12 = arith.constant 0 : i32
    %47 = vector.broadcast %c0_i32_12 : i32 to vector<1x32xi32>
    %48 = arith.cmpi sge, %46, %47 : vector<1x32xi32>
    %c16_i32_13 = arith.constant 16 : i32
    %49 = vector.broadcast %c16_i32_13 : i32 to vector<1x32xi32>
    %50 = arith.cmpi slt, %46, %49 : vector<1x32xi32>
    %51 = arith.andi %48, %50 : vector<1x32xi1>
    %cst_14 = arith.constant 0.000000e+00 : f32
    %52 = vector.broadcast %cst_14 : f32 to vector<4x32xf32>
    %53 = vector.shape_cast %51 : vector<1x32xi1> to vector<1x32xi1>
    %54 = vector.broadcast %53 : vector<1x32xi1> to vector<4x32xi1>
    %55 = arith.select %54, %44, %52 : vector<4x32xi1>, vector<4x32xf32>
    %c8 = arith.constant 8 : index
    %c0_15 = arith.constant 0 : index
    %56 = vector.load %arg11[%c8, %c0_15] : memref<36x32xf32, #tpu.memory_space<vmem>>, vector<4x32xf32>
    tpu.vector_store %arg11[%c8, %c0_15], %55 {strides = array<i32>} : memref<36x32xf32, #tpu.memory_space<vmem>>, vector<4x32xf32>,
    %c1_i32_16 = arith.constant 1 : i32
    %57 = tpu.dynamic_rotate %17 by %c1_i32_16 dim 1 : vector<4x32xf32>, i32 -> vector<4x32xf32>
    %c-1_i32 = arith.constant -1 : i32
    %58 = vector.broadcast %c-1_i32 : i32 to vector<1x32xi32>
    %59 = arith.addi %16, %58 : vector<1x32xi32>
    %c0_i32_17 = arith.constant 0 : i32
    %60 = vector.broadcast %c0_i32_17 : i32 to vector<1x32xi32>
    %61 = arith.cmpi sge, %59, %60 : vector<1x32xi32>
    %c16_i32_18 = arith.constant 16 : i32
    %62 = vector.broadcast %c16_i32_18 : i32 to vector<1x32xi32>
    %63 = arith.cmpi slt, %59, %62 : vector<1x32xi32>
    %64 = arith.andi %61, %63 : vector<1x32xi1>
    %cst_19 = arith.constant 0.000000e+00 : f32
    %65 = vector.broadcast %cst_19 : f32 to vector<4x32xf32>
    %66 = vector.shape_cast %64 : vector<1x32xi1> to vector<1x32xi1>
    %67 = vector.broadcast %66 : vector<1x32xi1> to vector<4x32xi1>
    %68 = arith.select %67, %57, %65 : vector<4x32xi1>, vector<4x32xf32>
    %c12 = arith.constant 12 : index
    %c0_20 = arith.constant 0 : index
    %69 = vector.load %arg11[%c12, %c0_20] : memref<36x32xf32, #tpu.memory_space<vmem>>, vector<4x32xf32>
    tpu.vector_store %arg11[%c12, %c0_20], %68 {strides = array<i32>} : memref<36x32xf32, #tpu.memory_space<vmem>>, vector<4x32xf32>,
    %c16 = arith.constant 16 : index
    %c0_21 = arith.constant 0 : index
    %70 = vector.load %arg11[%c16, %c0_21] : memref<36x32xf32, #tpu.memory_space<vmem>>, vector<4x32xf32>
    tpu.vector_store %arg11[%c16, %c0_21], %17 {strides = array<i32>} : memref<36x32xf32, #tpu.memory_space<vmem>>, vector<4x32xf32>,
    %c31_i32 = arith.constant 31 : i32
    %71 = tpu.dynamic_rotate %17 by %c31_i32 dim 1 : vector<4x32xf32>, i32 -> vector<4x32xf32>
    %c1_i32_22 = arith.constant 1 : i32
    %72 = vector.broadcast %c1_i32_22 : i32 to vector<1x32xi32>
    %73 = arith.addi %16, %72 : vector<1x32xi32>
    %c0_i32_23 = arith.constant 0 : i32
    %74 = vector.broadcast %c0_i32_23 : i32 to vector<1x32xi32>
    %75 = arith.cmpi sge, %73, %74 : vector<1x32xi32>
    %c16_i32_24 = arith.constant 16 : i32
    %76 = vector.broadcast %c16_i32_24 : i32 to vector<1x32xi32>
    %77 = arith.cmpi slt, %73, %76 : vector<1x32xi32>
    %78 = arith.andi %75, %77 : vector<1x32xi1>
    %cst_25 = arith.constant 0.000000e+00 : f32
    %79 = vector.broadcast %cst_25 : f32 to vector<4x32xf32>
    %80 = vector.shape_cast %78 : vector<1x32xi1> to vector<1x32xi1>
    %81 = vector.broadcast %80 : vector<1x32xi1> to vector<4x32xi1>
    %82 = arith.select %81, %71, %79 : vector<4x32xi1>, vector<4x32xf32>
    %c20 = arith.constant 20 : index
    %c0_26 = arith.constant 0 : index
    %83 = vector.load %arg11[%c20, %c0_26] : memref<36x32xf32, #tpu.memory_space<vmem>>, vector<4x32xf32>
    tpu.vector_store %arg11[%c20, %c0_26], %82 {strides = array<i32>} : memref<36x32xf32, #tpu.memory_space<vmem>>, vector<4x32xf32>,
    %c30_i32 = arith.constant 30 : i32
    %84 = tpu.dynamic_rotate %17 by %c30_i32 dim 1 : vector<4x32xf32>, i32 -> vector<4x32xf32>
    %c2_i32_27 = arith.constant 2 : i32
    %85 = vector.broadcast %c2_i32_27 : i32 to vector<1x32xi32>
    %86 = arith.addi %16, %85 : vector<1x32xi32>
    %c0_i32_28 = arith.constant 0 : i32
    %87 = vector.broadcast %c0_i32_28 : i32 to vector<1x32xi32>
    %88 = arith.cmpi sge, %86, %87 : vector<1x32xi32>
    %c16_i32_29 = arith.constant 16 : i32
    %89 = vector.broadcast %c16_i32_29 : i32 to vector<1x32xi32>
    %90 = arith.cmpi slt, %86, %89 : vector<1x32xi32>
    %91 = arith.andi %88, %90 : vector<1x32xi1>
    %cst_30 = arith.constant 0.000000e+00 : f32
    %92 = vector.broadcast %cst_30 : f32 to vector<4x32xf32>
    %93 = vector.shape_cast %91 : vector<1x32xi1> to vector<1x32xi1>
    %94 = vector.broadcast %93 : vector<1x32xi1> to vector<4x32xi1>
    %95 = arith.select %94, %84, %92 : vector<4x32xi1>, vector<4x32xf32>
    %c24 = arith.constant 24 : index
    %c0_31 = arith.constant 0 : index
    %96 = vector.load %arg11[%c24, %c0_31] : memref<36x32xf32, #tpu.memory_space<vmem>>, vector<4x32xf32>
    tpu.vector_store %arg11[%c24, %c0_31], %95 {strides = array<i32>} : memref<36x32xf32, #tpu.memory_space<vmem>>, vector<4x32xf32>,
    %c29_i32 = arith.constant 29 : i32
    %97 = tpu.dynamic_rotate %17 by %c29_i32 dim 1 : vector<4x32xf32>, i32 -> vector<4x32xf32>
    %c3_i32_32 = arith.constant 3 : i32
    %98 = vector.broadcast %c3_i32_32 : i32 to vector<1x32xi32>
    %99 = arith.addi %16, %98 : vector<1x32xi32>
    %c0_i32_33 = arith.constant 0 : i32
    %100 = vector.broadcast %c0_i32_33 : i32 to vector<1x32xi32>
    %101 = arith.cmpi sge, %99, %100 : vector<1x32xi32>
    %c16_i32_34 = arith.constant 16 : i32
    %102 = vector.broadcast %c16_i32_34 : i32 to vector<1x32xi32>
    %103 = arith.cmpi slt, %99, %102 : vector<1x32xi32>
    %104 = arith.andi %101, %103 : vector<1x32xi1>
    %cst_35 = arith.constant 0.000000e+00 : f32
    %105 = vector.broadcast %cst_35 : f32 to vector<4x32xf32>
    %106 = vector.shape_cast %104 : vector<1x32xi1> to vector<1x32xi1>
    %107 = vector.broadcast %106 : vector<1x32xi1> to vector<4x32xi1>
    %108 = arith.select %107, %97, %105 : vector<4x32xi1>, vector<4x32xf32>
    %c28 = arith.constant 28 : index
    %c0_36 = arith.constant 0 : index
    %109 = vector.load %arg11[%c28, %c0_36] : memref<36x32xf32, #tpu.memory_space<vmem>>, vector<4x32xf32>
    tpu.vector_store %arg11[%c28, %c0_36], %108 {strides = array<i32>} : memref<36x32xf32, #tpu.memory_space<vmem>>, vector<4x32xf32>,
    %c28_i32 = arith.constant 28 : i32
    %110 = tpu.dynamic_rotate %17 by %c28_i32 dim 1 : vector<4x32xf32>, i32 -> vector<4x32xf32>
    %c4_i32_37 = arith.constant 4 : i32
    %111 = vector.broadcast %c4_i32_37 : i32 to vector<1x32xi32>
    %112 = arith.addi %16, %111 : vector<1x32xi32>
    %c0_i32_38 = arith.constant 0 : i32
    %113 = vector.broadcast %c0_i32_38 : i32 to vector<1x32xi32>
    %114 = arith.cmpi sge, %112, %113 : vector<1x32xi32>
    %c16_i32_39 = arith.constant 16 : i32
    %115 = vector.broadcast %c16_i32_39 : i32 to vector<1x32xi32>
    %116 = arith.cmpi slt, %112, %115 : vector<1x32xi32>
    %117 = arith.andi %114, %116 : vector<1x32xi1>
    %cst_40 = arith.constant 0.000000e+00 : f32
    %118 = vector.broadcast %cst_40 : f32 to vector<4x32xf32>
    %119 = vector.shape_cast %117 : vector<1x32xi1> to vector<1x32xi1>
    %120 = vector.broadcast %119 : vector<1x32xi1> to vector<4x32xi1>
    %121 = arith.select %120, %110, %118 : vector<4x32xi1>, vector<4x32xf32>
    %c32 = arith.constant 32 : index
    %c0_41 = arith.constant 0 : index
    %122 = vector.load %arg11[%c32, %c0_41] : memref<36x32xf32, #tpu.memory_space<vmem>>, vector<4x32xf32>
    tpu.vector_store %arg11[%c32, %c0_41], %121 {strides = array<i32>} : memref<36x32xf32, #tpu.memory_space<vmem>>, vector<4x32xf32>,
    %c0_42 = arith.constant 0 : index
    %c0_43 = arith.constant 0 : index
    %123 = vector.load %arg1[%c0_42, %c0_43] : memref<8x36xf32, #tpu.memory_space<vmem>>, vector<8x36xf32>
    %c0_44 = arith.constant 0 : index
    %c0_45 = arith.constant 0 : index
    %124 = vector.load %arg11[%c0_44, %c0_45] : memref<36x32xf32, #tpu.memory_space<vmem>>, vector<36x32xf32>
    %cst_46 = arith.constant dense<0.000000e+00> : vector<8x32xf32>
    %125 = tpu.matmul %123, %124, %cst_46 {dimension_numbers = #tpu.dot_dimension_numbers<[1], [0], [0], [1], [0, 0, 1, 1], [], []>} : vector<8x36xf32>, vector<36x32xf32>, vector<8x32xf32> -> vector<8x32xf32>
    %c0_47 = arith.constant 0 : index
    %c0_48 = arith.constant 0 : index
    %126 = vector.load %arg2[%c0_47, %c0_48] : memref<8x1xf32, #tpu.memory_space<vmem>>, vector<8x1xf32>
    %c0_49 = arith.constant 0 : index
    %c0_50 = arith.constant 0 : index
    %127 = vector.load %arg3[%c0_49, %c0_50] : memref<8x1xf32, #tpu.memory_space<vmem>>, vector<8x1xf32>
    %cst_51 = arith.constant dense<0.000000e+00> : vector<8xf32>
    %128 = vector.multi_reduction <add>, %125, %cst_51 [1] : vector<8x32xf32> to vector<8xf32>
    %129 = vector.shape_cast %128 : vector<8xf32> to vector<8x1xf32>
    %cst_52 = arith.constant 3.125000e-02 : f32
    %130 = vector.broadcast %cst_52 : f32 to vector<8x1xf32>
    %131 = arith.mulf %129, %130 : vector<8x1xf32>
    %132 = vector.broadcast %131 : vector<8x1xf32> to vector<8x32xf32>
    %133 = arith.subf %125, %132 : vector<8x32xf32>
    %134 = arith.mulf %133, %133 : vector<8x32xf32>
    %cst_53 = arith.constant dense<0.000000e+00> : vector<8xf32>
    %135 = vector.multi_reduction <add>, %134, %cst_53 [1] : vector<8x32xf32> to vector<8xf32>
    %136 = vector.shape_cast %135 : vector<8xf32> to vector<8x1xf32>
    %cst_54 = arith.constant 3.125000e-02 : f32
    %137 = vector.broadcast %cst_54 : f32 to vector<8x1xf32>
    %138 = arith.mulf %136, %137 : vector<8x1xf32>
    %cst_55 = arith.constant 9.99999974E-6 : f32
    %139 = vector.broadcast %cst_55 : f32 to vector<8x1xf32>
    %140 = arith.addf %138, %139 : vector<8x1xf32>
    %141 = math.rsqrt %140 : vector<8x1xf32>
    %142 = arith.mulf %126, %141 : vector<8x1xf32>
    %143 = arith.mulf %131, %142 : vector<8x1xf32>
    %144 = arith.subf %127, %143 : vector<8x1xf32>
    %145 = vector.broadcast %142 : vector<8x1xf32> to vector<8x32xf32>
    %146 = arith.mulf %125, %145 : vector<8x32xf32>
    %147 = vector.broadcast %144 : vector<8x1xf32> to vector<8x32xf32>
    %148 = arith.addf %146, %147 : vector<8x32xf32>
    %cst_56 = arith.constant 0.000000e+00 : f32
    %149 = vector.broadcast %cst_56 : f32 to vector<8x32xf32>
    %150 = arith.maximumf %148, %149 : vector<8x32xf32>
    %cst_57 = arith.constant 0.000000e+00 : f32
    %151 = vector.broadcast %cst_57 : f32 to vector<8x32xf32>
    %c0_58 = arith.constant 0 : index
    %c0_59 = arith.constant 0 : index
    %c0_60 = arith.constant 0 : index
    %152 = vector.load %arg4[%c0_58, %c0_59, %c0_60] : memref<9x8x8xf32, #tpu.memory_space<vmem>>, vector<1x8x8xf32>
    %153 = vector.shape_cast %152 : vector<1x8x8xf32> to vector<8x8xf32>
    %c4_i32_61 = arith.constant 4 : i32
    %154 = tpu.dynamic_rotate %150 by %c4_i32_61 dim 1 : vector<8x32xf32>, i32 -> vector<8x32xf32>
    %c-4_i32_62 = arith.constant -4 : i32
    %155 = vector.broadcast %c-4_i32_62 : i32 to vector<1x32xi32>
    %156 = arith.addi %16, %155 : vector<1x32xi32>
    %c0_i32_63 = arith.constant 0 : i32
    %157 = vector.broadcast %c0_i32_63 : i32 to vector<1x32xi32>
    %158 = arith.cmpi sge, %156, %157 : vector<1x32xi32>
    %c16_i32_64 = arith.constant 16 : i32
    %159 = vector.broadcast %c16_i32_64 : i32 to vector<1x32xi32>
    %160 = arith.cmpi slt, %156, %159 : vector<1x32xi32>
    %161 = arith.andi %158, %160 : vector<1x32xi1>
    %cst_65 = arith.constant 0.000000e+00 : f32
    %162 = vector.broadcast %cst_65 : f32 to vector<8x32xf32>
    %163 = vector.shape_cast %161 : vector<1x32xi1> to vector<1x32xi1>
    %164 = vector.broadcast %163 : vector<1x32xi1> to vector<8x32xi1>
    %165 = arith.select %164, %154, %162 : vector<8x32xi1>, vector<8x32xf32>
    %cst_66 = arith.constant dense<0.000000e+00> : vector<8x32xf32>
    %166 = tpu.matmul %153, %165, %cst_66 {dimension_numbers = #tpu.dot_dimension_numbers<[1], [0], [0], [1], [0, 0, 1, 1], [], []>} : vector<8x8xf32>, vector<8x32xf32>, vector<8x32xf32> -> vector<8x32xf32>
    %167 = arith.addf %151, %166 : vector<8x32xf32>
    %c1 = arith.constant 1 : index
    %c0_67 = arith.constant 0 : index
    %c0_68 = arith.constant 0 : index
    %168 = vector.load %arg4[%c1, %c0_67, %c0_68] : memref<9x8x8xf32, #tpu.memory_space<vmem>>, vector<1x8x8xf32>
    %169 = vector.shape_cast %168 : vector<1x8x8xf32> to vector<8x8xf32>
    %c3_i32_69 = arith.constant 3 : i32
    %170 = tpu.dynamic_rotate %150 by %c3_i32_69 dim 1 : vector<8x32xf32>, i32 -> vector<8x32xf32>
    %c-3_i32_70 = arith.constant -3 : i32
    %171 = vector.broadcast %c-3_i32_70 : i32 to vector<1x32xi32>
    %172 = arith.addi %16, %171 : vector<1x32xi32>
    %c0_i32_71 = arith.constant 0 : i32
    %173 = vector.broadcast %c0_i32_71 : i32 to vector<1x32xi32>
    %174 = arith.cmpi sge, %172, %173 : vector<1x32xi32>
    %c16_i32_72 = arith.constant 16 : i32
    %175 = vector.broadcast %c16_i32_72 : i32 to vector<1x32xi32>
    %176 = arith.cmpi slt, %172, %175 : vector<1x32xi32>
    %177 = arith.andi %174, %176 : vector<1x32xi1>
    %cst_73 = arith.constant 0.000000e+00 : f32
    %178 = vector.broadcast %cst_73 : f32 to vector<8x32xf32>
    %179 = vector.shape_cast %177 : vector<1x32xi1> to vector<1x32xi1>
    %180 = vector.broadcast %179 : vector<1x32xi1> to vector<8x32xi1>
    %181 = arith.select %180, %170, %178 : vector<8x32xi1>, vector<8x32xf32>
    %cst_74 = arith.constant dense<0.000000e+00> : vector<8x32xf32>
    %182 = tpu.matmul %169, %181, %cst_74 {dimension_numbers = #tpu.dot_dimension_numbers<[1], [0], [0], [1], [0, 0, 1, 1], [], []>} : vector<8x8xf32>, vector<8x32xf32>, vector<8x32xf32> -> vector<8x32xf32>
    %183 = arith.addf %167, %182 : vector<8x32xf32>
    %c2 = arith.constant 2 : index
    %c0_75 = arith.constant 0 : index
    %c0_76 = arith.constant 0 : index
    %184 = vector.load %arg4[%c2, %c0_75, %c0_76] : memref<9x8x8xf32, #tpu.memory_space<vmem>>, vector<1x8x8xf32>
    %185 = vector.shape_cast %184 : vector<1x8x8xf32> to vector<8x8xf32>
    %c2_i32_77 = arith.constant 2 : i32
    %186 = tpu.dynamic_rotate %150 by %c2_i32_77 dim 1 : vector<8x32xf32>, i32 -> vector<8x32xf32>
    %c-2_i32_78 = arith.constant -2 : i32
    %187 = vector.broadcast %c-2_i32_78 : i32 to vector<1x32xi32>
    %188 = arith.addi %16, %187 : vector<1x32xi32>
    %c0_i32_79 = arith.constant 0 : i32
    %189 = vector.broadcast %c0_i32_79 : i32 to vector<1x32xi32>
    %190 = arith.cmpi sge, %188, %189 : vector<1x32xi32>
    %c16_i32_80 = arith.constant 16 : i32
    %191 = vector.broadcast %c16_i32_80 : i32 to vector<1x32xi32>
    %192 = arith.cmpi slt, %188, %191 : vector<1x32xi32>
    %193 = arith.andi %190, %192 : vector<1x32xi1>
    %cst_81 = arith.constant 0.000000e+00 : f32
    %194 = vector.broadcast %cst_81 : f32 to vector<8x32xf32>
    %195 = vector.shape_cast %193 : vector<1x32xi1> to vector<1x32xi1>
    %196 = vector.broadcast %195 : vector<1x32xi1> to vector<8x32xi1>
    %197 = arith.select %196, %186, %194 : vector<8x32xi1>, vector<8x32xf32>
    %cst_82 = arith.constant dense<0.000000e+00> : vector<8x32xf32>
    %198 = tpu.matmul %185, %197, %cst_82 {dimension_numbers = #tpu.dot_dimension_numbers<[1], [0], [0], [1], [0, 0, 1, 1], [], []>} : vector<8x8xf32>, vector<8x32xf32>, vector<8x32xf32> -> vector<8x32xf32>
    %199 = arith.addf %183, %198 : vector<8x32xf32>
    %c3 = arith.constant 3 : index
    %c0_83 = arith.constant 0 : index
    %c0_84 = arith.constant 0 : index
    %200 = vector.load %arg4[%c3, %c0_83, %c0_84] : memref<9x8x8xf32, #tpu.memory_space<vmem>>, vector<1x8x8xf32>
    %201 = vector.shape_cast %200 : vector<1x8x8xf32> to vector<8x8xf32>
    %c1_i32_85 = arith.constant 1 : i32
    %202 = tpu.dynamic_rotate %150 by %c1_i32_85 dim 1 : vector<8x32xf32>, i32 -> vector<8x32xf32>
    %c-1_i32_86 = arith.constant -1 : i32
    %203 = vector.broadcast %c-1_i32_86 : i32 to vector<1x32xi32>
    %204 = arith.addi %16, %203 : vector<1x32xi32>
    %c0_i32_87 = arith.constant 0 : i32
    %205 = vector.broadcast %c0_i32_87 : i32 to vector<1x32xi32>
    %206 = arith.cmpi sge, %204, %205 : vector<1x32xi32>
    %c16_i32_88 = arith.constant 16 : i32
    %207 = vector.broadcast %c16_i32_88 : i32 to vector<1x32xi32>
    %208 = arith.cmpi slt, %204, %207 : vector<1x32xi32>
    %209 = arith.andi %206, %208 : vector<1x32xi1>
    %cst_89 = arith.constant 0.000000e+00 : f32
    %210 = vector.broadcast %cst_89 : f32 to vector<8x32xf32>
    %211 = vector.shape_cast %209 : vector<1x32xi1> to vector<1x32xi1>
    %212 = vector.broadcast %211 : vector<1x32xi1> to vector<8x32xi1>
    %213 = arith.select %212, %202, %210 : vector<8x32xi1>, vector<8x32xf32>
    %cst_90 = arith.constant dense<0.000000e+00> : vector<8x32xf32>
    %214 = tpu.matmul %201, %213, %cst_90 {dimension_numbers = #tpu.dot_dimension_numbers<[1], [0], [0], [1], [0, 0, 1, 1], [], []>} : vector<8x8xf32>, vector<8x32xf32>, vector<8x32xf32> -> vector<8x32xf32>
    %215 = arith.addf %199, %214 : vector<8x32xf32>
    %c4_91 = arith.constant 4 : index
    %c0_92 = arith.constant 0 : index
    %c0_93 = arith.constant 0 : index
    %216 = vector.load %arg4[%c4_91, %c0_92, %c0_93] : memref<9x8x8xf32, #tpu.memory_space<vmem>>, vector<1x8x8xf32>
    %217 = vector.shape_cast %216 : vector<1x8x8xf32> to vector<8x8xf32>
    %cst_94 = arith.constant dense<0.000000e+00> : vector<8x32xf32>
    %218 = tpu.matmul %217, %150, %cst_94 {dimension_numbers = #tpu.dot_dimension_numbers<[1], [0], [0], [1], [0, 0, 1, 1], [], []>} : vector<8x8xf32>, vector<8x32xf32>, vector<8x32xf32> -> vector<8x32xf32>
    %219 = arith.addf %215, %218 : vector<8x32xf32>
    %c5 = arith.constant 5 : index
    %c0_95 = arith.constant 0 : index
    %c0_96 = arith.constant 0 : index
    %220 = vector.load %arg4[%c5, %c0_95, %c0_96] : memref<9x8x8xf32, #tpu.memory_space<vmem>>, vector<1x8x8xf32>
    %221 = vector.shape_cast %220 : vector<1x8x8xf32> to vector<8x8xf32>
    %c31_i32_97 = arith.constant 31 : i32
    %222 = tpu.dynamic_rotate %150 by %c31_i32_97 dim 1 : vector<8x32xf32>, i32 -> vector<8x32xf32>
    %c1_i32_98 = arith.constant 1 : i32
    %223 = vector.broadcast %c1_i32_98 : i32 to vector<1x32xi32>
    %224 = arith.addi %16, %223 : vector<1x32xi32>
    %c0_i32_99 = arith.constant 0 : i32
    %225 = vector.broadcast %c0_i32_99 : i32 to vector<1x32xi32>
    %226 = arith.cmpi sge, %224, %225 : vector<1x32xi32>
    %c16_i32_100 = arith.constant 16 : i32
    %227 = vector.broadcast %c16_i32_100 : i32 to vector<1x32xi32>
    %228 = arith.cmpi slt, %224, %227 : vector<1x32xi32>
    %229 = arith.andi %226, %228 : vector<1x32xi1>
    %cst_101 = arith.constant 0.000000e+00 : f32
    %230 = vector.broadcast %cst_101 : f32 to vector<8x32xf32>
    %231 = vector.shape_cast %229 : vector<1x32xi1> to vector<1x32xi1>
    %232 = vector.broadcast %231 : vector<1x32xi1> to vector<8x32xi1>
    %233 = arith.select %232, %222, %230 : vector<8x32xi1>, vector<8x32xf32>
    %cst_102 = arith.constant dense<0.000000e+00> : vector<8x32xf32>
    %234 = tpu.matmul %221, %233, %cst_102 {dimension_numbers = #tpu.dot_dimension_numbers<[1], [0], [0], [1], [0, 0, 1, 1], [], []>} : vector<8x8xf32>, vector<8x32xf32>, vector<8x32xf32> -> vector<8x32xf32>
    %235 = arith.addf %219, %234 : vector<8x32xf32>
    %c6 = arith.constant 6 : index
    %c0_103 = arith.constant 0 : index
    %c0_104 = arith.constant 0 : index
    %236 = vector.load %arg4[%c6, %c0_103, %c0_104] : memref<9x8x8xf32, #tpu.memory_space<vmem>>, vector<1x8x8xf32>
    %237 = vector.shape_cast %236 : vector<1x8x8xf32> to vector<8x8xf32>
    %c30_i32_105 = arith.constant 30 : i32
    %238 = tpu.dynamic_rotate %150 by %c30_i32_105 dim 1 : vector<8x32xf32>, i32 -> vector<8x32xf32>
    %c2_i32_106 = arith.constant 2 : i32
    %239 = vector.broadcast %c2_i32_106 : i32 to vector<1x32xi32>
    %240 = arith.addi %16, %239 : vector<1x32xi32>
    %c0_i32_107 = arith.constant 0 : i32
    %241 = vector.broadcast %c0_i32_107 : i32 to vector<1x32xi32>
    %242 = arith.cmpi sge, %240, %241 : vector<1x32xi32>
    %c16_i32_108 = arith.constant 16 : i32
    %243 = vector.broadcast %c16_i32_108 : i32 to vector<1x32xi32>
    %244 = arith.cmpi slt, %240, %243 : vector<1x32xi32>
    %245 = arith.andi %242, %244 : vector<1x32xi1>
    %cst_109 = arith.constant 0.000000e+00 : f32
    %246 = vector.broadcast %cst_109 : f32 to vector<8x32xf32>
    %247 = vector.shape_cast %245 : vector<1x32xi1> to vector<1x32xi1>
    %248 = vector.broadcast %247 : vector<1x32xi1> to vector<8x32xi1>
    %249 = arith.select %248, %238, %246 : vector<8x32xi1>, vector<8x32xf32>
    %cst_110 = arith.constant dense<0.000000e+00> : vector<8x32xf32>
    %250 = tpu.matmul %237, %249, %cst_110 {dimension_numbers = #tpu.dot_dimension_numbers<[1], [0], [0], [1], [0, 0, 1, 1], [], []>} : vector<8x8xf32>, vector<8x32xf32>, vector<8x32xf32> -> vector<8x32xf32>
    %251 = arith.addf %235, %250 : vector<8x32xf32>
    %c7 = arith.constant 7 : index
    %c0_111 = arith.constant 0 : index
    %c0_112 = arith.constant 0 : index
    %252 = vector.load %arg4[%c7, %c0_111, %c0_112] : memref<9x8x8xf32, #tpu.memory_space<vmem>>, vector<1x8x8xf32>
    %253 = vector.shape_cast %252 : vector<1x8x8xf32> to vector<8x8xf32>
    %c29_i32_113 = arith.constant 29 : i32
    %254 = tpu.dynamic_rotate %150 by %c29_i32_113 dim 1 : vector<8x32xf32>, i32 -> vector<8x32xf32>
    %c3_i32_114 = arith.constant 3 : i32
    %255 = vector.broadcast %c3_i32_114 : i32 to vector<1x32xi32>
    %256 = arith.addi %16, %255 : vector<1x32xi32>
    %c0_i32_115 = arith.constant 0 : i32
    %257 = vector.broadcast %c0_i32_115 : i32 to vector<1x32xi32>
    %258 = arith.cmpi sge, %256, %257 : vector<1x32xi32>
    %c16_i32_116 = arith.constant 16 : i32
    %259 = vector.broadcast %c16_i32_116 : i32 to vector<1x32xi32>
    %260 = arith.cmpi slt, %256, %259 : vector<1x32xi32>
    %261 = arith.andi %258, %260 : vector<1x32xi1>
    %cst_117 = arith.constant 0.000000e+00 : f32
    %262 = vector.broadcast %cst_117 : f32 to vector<8x32xf32>
    %263 = vector.shape_cast %261 : vector<1x32xi1> to vector<1x32xi1>
    %264 = vector.broadcast %263 : vector<1x32xi1> to vector<8x32xi1>
    %265 = arith.select %264, %254, %262 : vector<8x32xi1>, vector<8x32xf32>
    %cst_118 = arith.constant dense<0.000000e+00> : vector<8x32xf32>
    %266 = tpu.matmul %253, %265, %cst_118 {dimension_numbers = #tpu.dot_dimension_numbers<[1], [0], [0], [1], [0, 0, 1, 1], [], []>} : vector<8x8xf32>, vector<8x32xf32>, vector<8x32xf32> -> vector<8x32xf32>
    %267 = arith.addf %251, %266 : vector<8x32xf32>
    %c8_119 = arith.constant 8 : index
    %c0_120 = arith.constant 0 : index
    %c0_121 = arith.constant 0 : index
    %268 = vector.load %arg4[%c8_119, %c0_120, %c0_121] : memref<9x8x8xf32, #tpu.memory_space<vmem>>, vector<1x8x8xf32>
    %269 = vector.shape_cast %268 : vector<1x8x8xf32> to vector<8x8xf32>
    %c28_i32_122 = arith.constant 28 : i32
    %270 = tpu.dynamic_rotate %150 by %c28_i32_122 dim 1 : vector<8x32xf32>, i32 -> vector<8x32xf32>
    %c4_i32_123 = arith.constant 4 : i32
    %271 = vector.broadcast %c4_i32_123 : i32 to vector<1x32xi32>
    %272 = arith.addi %16, %271 : vector<1x32xi32>
    %c0_i32_124 = arith.constant 0 : i32
    %273 = vector.broadcast %c0_i32_124 : i32 to vector<1x32xi32>
    %274 = arith.cmpi sge, %272, %273 : vector<1x32xi32>
    %c16_i32_125 = arith.constant 16 : i32
    %275 = vector.broadcast %c16_i32_125 : i32 to vector<1x32xi32>
    %276 = arith.cmpi slt, %272, %275 : vector<1x32xi32>
    %277 = arith.andi %274, %276 : vector<1x32xi1>
    %cst_126 = arith.constant 0.000000e+00 : f32
    %278 = vector.broadcast %cst_126 : f32 to vector<8x32xf32>
    %279 = vector.shape_cast %277 : vector<1x32xi1> to vector<1x32xi1>
    %280 = vector.broadcast %279 : vector<1x32xi1> to vector<8x32xi1>
    %281 = arith.select %280, %270, %278 : vector<8x32xi1>, vector<8x32xf32>
    %cst_127 = arith.constant dense<0.000000e+00> : vector<8x32xf32>
    %282 = tpu.matmul %269, %281, %cst_127 {dimension_numbers = #tpu.dot_dimension_numbers<[1], [0], [0], [1], [0, 0, 1, 1], [], []>} : vector<8x8xf32>, vector<8x32xf32>, vector<8x32xf32> -> vector<8x32xf32>
    %283 = arith.addf %267, %282 : vector<8x32xf32>
    %c0_128 = arith.constant 0 : index
    %c0_129 = arith.constant 0 : index
    %284 = vector.load %arg5[%c0_128, %c0_129] : memref<8x1xf32, #tpu.memory_space<vmem>>, vector<8x1xf32>
    %c0_130 = arith.constant 0 : index
    %c0_131 = arith.constant 0 : index
    %285 = vector.load %arg6[%c0_130, %c0_131] : memref<8x1xf32, #tpu.memory_space<vmem>>, vector<8x1xf32>
    %cst_132 = arith.constant dense<0.000000e+00> : vector<8xf32>
    %286 = vector.multi_reduction <add>, %283, %cst_132 [1] : vector<8x32xf32> to vector<8xf32>
    %287 = vector.shape_cast %286 : vector<8xf32> to vector<8x1xf32>
    %cst_133 = arith.constant 3.125000e-02 : f32
    %288 = vector.broadcast %cst_133 : f32 to vector<8x1xf32>
    %289 = arith.mulf %287, %288 : vector<8x1xf32>
    %290 = vector.broadcast %289 : vector<8x1xf32> to vector<8x32xf32>
    %291 = arith.subf %283, %290 : vector<8x32xf32>
    %292 = arith.mulf %291, %291 : vector<8x32xf32>
    %cst_134 = arith.constant dense<0.000000e+00> : vector<8xf32>
    %293 = vector.multi_reduction <add>, %292, %cst_134 [1] : vector<8x32xf32> to vector<8xf32>
    %294 = vector.shape_cast %293 : vector<8xf32> to vector<8x1xf32>
    %cst_135 = arith.constant 3.125000e-02 : f32
    %295 = vector.broadcast %cst_135 : f32 to vector<8x1xf32>
    %296 = arith.mulf %294, %295 : vector<8x1xf32>
    %cst_136 = arith.constant 9.99999974E-6 : f32
    %297 = vector.broadcast %cst_136 : f32 to vector<8x1xf32>
    %298 = arith.addf %296, %297 : vector<8x1xf32>
    %299 = math.rsqrt %298 : vector<8x1xf32>
    %300 = arith.mulf %284, %299 : vector<8x1xf32>
    %301 = arith.mulf %289, %300 : vector<8x1xf32>
    %302 = arith.subf %285, %301 : vector<8x1xf32>
    %c0_137 = arith.constant 0 : index
    %c0_138 = arith.constant 0 : index
    %303 = vector.load %arg7[%c0_137, %c0_138] : memref<8x4xf32, #tpu.memory_space<vmem>>, vector<8x4xf32>
    %cst_139 = arith.constant dense<0.000000e+00> : vector<8x32xf32>
    %304 = tpu.matmul %303, %17, %cst_139 {dimension_numbers = #tpu.dot_dimension_numbers<[1], [0], [0], [1], [0, 0, 1, 1], [], []>} : vector<8x4xf32>, vector<4x32xf32>, vector<8x32xf32> -> vector<8x32xf32>
    %c0_140 = arith.constant 0 : index
    %c0_141 = arith.constant 0 : index
    %305 = vector.load %arg8[%c0_140, %c0_141] : memref<8x1xf32, #tpu.memory_space<vmem>>, vector<8x1xf32>
    %c0_142 = arith.constant 0 : index
    %c0_143 = arith.constant 0 : index
    %306 = vector.load %arg9[%c0_142, %c0_143] : memref<8x1xf32, #tpu.memory_space<vmem>>, vector<8x1xf32>
    %cst_144 = arith.constant dense<0.000000e+00> : vector<8xf32>
    %307 = vector.multi_reduction <add>, %304, %cst_144 [1] : vector<8x32xf32> to vector<8xf32>
    %308 = vector.shape_cast %307 : vector<8xf32> to vector<8x1xf32>
    %cst_145 = arith.constant 3.125000e-02 : f32
    %309 = vector.broadcast %cst_145 : f32 to vector<8x1xf32>
    %310 = arith.mulf %308, %309 : vector<8x1xf32>
    %311 = vector.broadcast %310 : vector<8x1xf32> to vector<8x32xf32>
    %312 = arith.subf %304, %311 : vector<8x32xf32>
    %313 = arith.mulf %312, %312 : vector<8x32xf32>
    %cst_146 = arith.constant dense<0.000000e+00> : vector<8xf32>
    %314 = vector.multi_reduction <add>, %313, %cst_146 [1] : vector<8x32xf32> to vector<8xf32>
    %315 = vector.shape_cast %314 : vector<8xf32> to vector<8x1xf32>
    %cst_147 = arith.constant 3.125000e-02 : f32
    %316 = vector.broadcast %cst_147 : f32 to vector<8x1xf32>
    %317 = arith.mulf %315, %316 : vector<8x1xf32>
    %cst_148 = arith.constant 9.99999974E-6 : f32
    %318 = vector.broadcast %cst_148 : f32 to vector<8x1xf32>
    %319 = arith.addf %317, %318 : vector<8x1xf32>
    %320 = math.rsqrt %319 : vector<8x1xf32>
    %321 = arith.mulf %305, %320 : vector<8x1xf32>
    %322 = arith.mulf %310, %321 : vector<8x1xf32>
    %323 = arith.subf %306, %322 : vector<8x1xf32>
    %324 = vector.broadcast %321 : vector<8x1xf32> to vector<8x32xf32>
    %325 = arith.mulf %304, %324 : vector<8x32xf32>
    %326 = arith.addf %302, %323 : vector<8x1xf32>
    %327 = vector.broadcast %300 : vector<8x1xf32> to vector<8x32xf32>
    %328 = arith.mulf %283, %327 : vector<8x32xf32>
    %329 = arith.addf %328, %325 : vector<8x32xf32>
    %330 = vector.broadcast %326 : vector<8x1xf32> to vector<8x32xf32>
    %331 = arith.addf %329, %330 : vector<8x32xf32>
    %cst_149 = arith.constant 0.000000e+00 : f32
    %332 = vector.broadcast %cst_149 : f32 to vector<8x32xf32>
    %333 = arith.maximumf %331, %332 : vector<8x32xf32>
    %c0_150 = arith.constant 0 : index
    %c0_151 = arith.constant 0 : index
    %334 = vector.load %arg10[%c0_150, %c0_151] : memref<8x32xf32, #tpu.memory_space<vmem>>, vector<8x32xf32>
    tpu.vector_store %arg10[%c0_150, %c0_151], %333 {strides = array<i32>} : memref<8x32xf32, #tpu.memory_space<vmem>>, vector<8x32xf32>,
    return
  }
}

</mosaic_0001>

<llo_original>
// kernel: tpu_custom_call.1
$region0: #{tpu_custom_call.1}
  #allocation0 [shape = 'u32[]', space=smem, size = 0x4, offset = 0x4, fixed_abs, tag = 'smem constant byte address 0x4 - core index']
  #allocation1 [shape = 'u32[72,128]{1,0:T(1,128)}', space=vmem, size = 0x9000, scoped, tag = 'internal scratch']
  #allocation2 [shape = 'f32[36,32]{1,0:T(8,128)}', space=vmem, size = 0x5000, scoped, tag = 'scratch operand']
  %s0 = inlined_call_operand.vmem [shape: f32[4,32], index: 0, kind: input, shape index: {}]
  %s1 = inlined_call_operand.vmem [shape: f32[8,36], index: 1, kind: input, shape index: {}]
  %s2 = inlined_call_operand.vmem [shape: f32[8,1], index: 2, kind: input, shape index: {}]
  %s3 = inlined_call_operand.vmem [shape: f32[8,1], index: 3, kind: input, shape index: {}]
  %s4 = inlined_call_operand.vmem [shape: f32[9,8,8], index: 4, kind: input, shape index: {}]
  %s5 = inlined_call_operand.vmem [shape: f32[8,1], index: 5, kind: input, shape index: {}]
  %s6 = inlined_call_operand.vmem [shape: f32[8,1], index: 6, kind: input, shape index: {}]
  %s7 = inlined_call_operand.vmem [shape: f32[8,4], index: 7, kind: input, shape index: {}]
  %s8 = inlined_call_operand.vmem [shape: f32[8,1], index: 8, kind: input, shape index: {}]
  %s9 = inlined_call_operand.vmem [shape: f32[8,1], index: 9, kind: input, shape index: {}]
  %s10 = inlined_call_operand.hbm [shape: f32[8,32], index: 10, kind: output, shape index: {}]
  %s11 = sld [smem:[#allocation0]]
  $region50: #{tpu_custom_call.1} parent=0
    _
  %s13 = ssub.s32 1, %s11
  %s14 = scalar_select 0, %s13, %s11
  $region1: #{tpu_custom_call.1} parent=0
    #allocation3 [shape = 'u8[4096]{0}', space=vmem, size = 0x1000, scoped, tag = 'output window, operand 0, single buffered']
    #allocation4 [shape = 's32[1]{0}', space=sflag, size = 0x4, scoped, tag = 'scoped memory for tpu_custom_call.1']
    %15 = vsyncpa [#allocation4], 0
    // Predicated region
    $region2: #{tpu_custom_call.1} parent=1 // pred_check
      _
    $region3: #{tpu_custom_call.1} parent=1 // pred_check_branch
      %17 = sbr.rel (0) target = $region5
    $region4: #{tpu_custom_call.1} parent=1 // pred_region
      _
    $region5: #{tpu_custom_call.1} parent=1 // pred_fallthru
      _
    // Predicated region
    $region6: #{tpu_custom_call.1} parent=1 // pred_check
      _
    $region7: #{tpu_custom_call.1} parent=1 // pred_check_branch
      %19 = sbr.rel (0) target = $region9
    $region8: #{tpu_custom_call.1} parent=1 // pred_region
      _
    $region9: #{tpu_custom_call.1} parent=1 // pred_fallthru
      _
    // Predicated region
    $region10: #{tpu_custom_call.1} parent=1 // pred_check
      _
    $region11: #{tpu_custom_call.1} parent=1 // pred_check_branch
      %21 = sbr.rel (0) target = $region13
    $region12: #{tpu_custom_call.1} parent=1 // pred_region
      _
    $region13: #{tpu_custom_call.1} parent=1 // pred_fallthru
      _
    // Predicated region
    $region14: #{tpu_custom_call.1} parent=1 // pred_check
      _
    $region15: #{tpu_custom_call.1} parent=1 // pred_check_branch
      %23 = sbr.rel (0) target = $region17
    $region16: #{tpu_custom_call.1} parent=1 // pred_region
      _
    $region17: #{tpu_custom_call.1} parent=1 // pred_fallthru
      _
    // Predicated region
    $region18: #{tpu_custom_call.1} parent=1 // pred_check
      _
    $region19: #{tpu_custom_call.1} parent=1 // pred_check_branch
      %25 = sbr.rel (0) target = $region21
    $region20: #{tpu_custom_call.1} parent=1 // pred_region
      _
    $region21: #{tpu_custom_call.1} parent=1 // pred_fallthru
      _
    // Predicated region
    $region22: #{tpu_custom_call.1} parent=1 // pred_check
      _
    $region23: #{tpu_custom_call.1} parent=1 // pred_check_branch
      %27 = sbr.rel (0) target = $region25
    $region24: #{tpu_custom_call.1} parent=1 // pred_region
      _
    $region25: #{tpu_custom_call.1} parent=1 // pred_fallthru
      _
    // Predicated region
    $region26: #{tpu_custom_call.1} parent=1 // pred_check
      _
    $region27: #{tpu_custom_call.1} parent=1 // pred_check_branch
      %29 = sbr.rel (0) target = $region29
    $region28: #{tpu_custom_call.1} parent=1 // pred_region
      _
    $region29: #{tpu_custom_call.1} parent=1 // pred_fallthru
      _
    // Predicated region
    $region30: #{tpu_custom_call.1} parent=1 // pred_check
      _
    $region31: #{tpu_custom_call.1} parent=1 // pred_check_branch
      %31 = sbr.rel (0) target = $region33
    $region32: #{tpu_custom_call.1} parent=1 // pred_region
      _
    $region33: #{tpu_custom_call.1} parent=1 // pred_fallthru
      _
    // Predicated region
    $region34: #{tpu_custom_call.1} parent=1 // pred_check
      _
    $region35: #{tpu_custom_call.1} parent=1 // pred_check_branch
      %33 = sbr.rel (0) target = $region37
    $region36: #{tpu_custom_call.1} parent=1 // pred_region
      _
    $region37: #{tpu_custom_call.1} parent=1 // pred_fallthru
      _
    // Predicated region
    $region38: #{tpu_custom_call.1} parent=1 // pred_check
      _
    $region39: #{tpu_custom_call.1} parent=1 // pred_check_branch
      %35 = sbr.rel (0) target = $region41
    $region40: #{tpu_custom_call.1} parent=1 // pred_region
      _
    $region41: #{tpu_custom_call.1} parent=1 // pred_fallthru
      _
    %v36 = vlaneseq
    %v37 = vand.u32 %v36, 127
    %vm38 = vcmp.lt.s32.totalorder %v37, 0
    %v39 = vsub.s32 0, %v37
    %v40 = vsel %vm38, %v39, %v37
    %v41 = vshrl.u32 %v40, 4
    %v42 = vand.u32 %v40, 15
    %v43 = vsub.s32 0, %v42
    %v44 = vsel %vm38, %v43, %v42
    %vm45 = vcmp.ne.s32.totalorder %v44, 0
    %vm46 = vcmp.lt.s32.totalorder %v44, 0
    %vm47 = vmand %vm46, %vm45
    %v48 = vadd.s32 %v44, 16
    %v49 = vsel %vm47, %v48, %v44
    %v50 = vld [vmem:[%s0] sm:$0xf]
    %vm51 = vcmask 1047808
    %52 = vrot.lane.b32.xlu0 %v50, 32
    %v53 = vpop.permute.xlu0 %52
    %v54 = vsel %vm51, %v53, %v50
    %55 = vrot.lane.b32.xlu0 %v54, 32
    %v56 = vpop.permute.xlu0 %55
    %v57 = vsel %vm51, %v56, %v50
    %v58 = vadd.s32 %v49, 4294967292
    %vm59 = vcmp.ge.s32.totalorder %v58, 0
    %vm60 = vcmp.lt.s32.totalorder %v58, 16
    %vm61 = vmand %vm59, %vm60
    %v62 = vsel %vm61, 1, 0
    %vm63 = vcmp.eq.s32.totalorder %v62, 1
    %65 = vrot.lane.b32.xlu0 %v57, 100
    %v66 = vpop.permute.xlu0 %65
    %v68 = vsel %vm63, %v66, 0.0
    %vm69 = vcmask 257024
    %70 = vst.msk [vmem:[#allocation2] sm:$0xf] %vm69, %v68
    %v71 = vadd.s32 %v49, 4294967293
    %vm72 = vcmp.ge.s32.totalorder %v71, 0
    %vm73 = vcmp.lt.s32.totalorder %v71, 16
    %vm74 = vmand %vm72, %vm73
    %v75 = vsel %vm74, 1, 0
    %vm76 = vcmp.eq.s32.totalorder %v75, 1
    %77 = vrot.lane.b32.xlu0 %v57, 99
    %v78 = vpop.permute.xlu0 %77
    %v80 = vsel %vm76, %v78, 0.0
    %81 = vst.msk [vmem:[#allocation2 + $0x4] sm:$0xf] %vm69, %v80
    %v82 = vadd.s32 %v49, 4294967294
    %vm83 = vcmp.ge.s32.totalorder %v82, 0
    %vm84 = vcmp.lt.s32.totalorder %v82, 16
    %vm85 = vmand %vm83, %vm84
    %v86 = vsel %vm85, 1, 0
    %vm87 = vcmp.eq.s32.totalorder %v86, 1
    %88 = vrot.lane.b32.xlu0 %v57, 98
    %v89 = vpop.permute.xlu0 %88
    %v91 = vsel %vm87, %v89, 0.0
    %92 = vst.msk [vmem:[#allocation2 + $0x8] sm:$0xf] %vm69, %v91
    %v93 = vadd.s32 %v49, 4294967295
    %vm94 = vcmp.ge.s32.totalorder %v93, 0
    %vm95 = vcmp.lt.s32.totalorder %v93, 16
    %vm96 = vmand %vm94, %vm95
    %v97 = vsel %vm96, 1, 0
    %vm98 = vcmp.eq.s32.totalorder %v97, 1
    %99 = vrot.lane.b32.xlu0 %v57, 97
    %v100 = vpop.permute.xlu0 %99
    %v102 = vsel %vm98, %v100, 0.0
    %103 = vst.msk [vmem:[#allocation2 + $0xc] sm:$0xf] %vm69, %v102
    %104 = vst.msk [vmem:[#allocation2 + $0x10] sm:$0xf] %vm69, %v50
    %v105 = vadd.s32 %v49, 1
    %vm106 = vcmp.ge.s32.totalorder %v105, 0
    %vm107 = vcmp.lt.s32.totalorder %v105, 16
    %vm108 = vmand %vm106, %vm107
    %v109 = vsel %vm108, 1, 0
    %vm110 = vcmp.eq.s32.totalorder %v109, 1
    %111 = vrot.lane.b32.xlu0 %v57, 127
    %v112 = vpop.permute.xlu0 %111
    %v114 = vsel %vm110, %v112, 0.0
    %115 = vst.msk [vmem:[#allocation2 + $0x14] sm:$0xf] %vm69, %v114
    %v116 = vadd.s32 %v49, 2
    %vm117 = vcmp.ge.s32.totalorder %v116, 0
    %vm118 = vcmp.lt.s32.totalorder %v116, 16
    %vm119 = vmand %vm117, %vm118
    %v120 = vsel %vm119, 1, 0
    %vm121 = vcmp.eq.s32.totalorder %v120, 1
    %122 = vrot.lane.b32.xlu0 %v57, 126
    %v123 = vpop.permute.xlu0 %122
    %v125 = vsel %vm121, %v123, 0.0
    %126 = vst.msk [vmem:[#allocation2 + $0x18] sm:$0xf] %vm69, %v125
    %v127 = vadd.s32 %v49, 3
    %vm128 = vcmp.ge.s32.totalorder %v127, 0
    %vm129 = vcmp.lt.s32.totalorder %v127, 16
    %vm130 = vmand %vm128, %vm129
    %v131 = vsel %vm130, 1, 0
    %vm132 = vcmp.eq.s32.totalorder %v131, 1
    %133 = vrot.lane.b32.xlu0 %v57, 125
    %v134 = vpop.permute.xlu0 %133
    %v136 = vsel %vm132, %v134, 0.0
    %137 = vst.msk [vmem:[#allocation2 + $0x1c] sm:$0xf] %vm69, %v136
    %v138 = vadd.s32 %v49, 4
    %vm139 = vcmp.ge.s32.totalorder %v138, 0
    %vm140 = vcmp.lt.s32.totalorder %v138, 16
    %vm141 = vmand %vm139, %vm140
    %v142 = vsel %vm141, 1, 0
    %vm143 = vcmp.eq.s32.totalorder %v142, 1
    %144 = vrot.lane.b32.xlu0 %v57, 124
    %v145 = vpop.permute.xlu0 %144
    %v147 = vsel %vm143, %v145, 0.0
    %148 = vst.msk [vmem:[#allocation2 + $0x20] sm:$0xf] %vm69, %v147
    %v149 = vld [vmem:[%s1] sm:$0xff]
    %v150 = vld [vmem:[#allocation2] sm:$0xff]
    %v151 = vld [vmem:[#allocation2 + $0x8] sm:$0xff]
    %v152 = vld [vmem:[#allocation2 + $0x10] sm:$0xff]
    %v153 = vld [vmem:[#allocation2 + $0x18] sm:$0xff]
    %v154 = vld [vmem:[#allocation2 + $0x20] sm:$0xf]
    %vm155 = vcmask 293888
    %v157 = vsel %vm155, %v149, 0
    %vm159 = vcmask 1043456
    %v161 = vsel %vm159, %v154, 0
    %163 = vmatpush.msra.mxu0 0.0
    %164 = vmatpush.msra.mxu0 0.0
    %165 = vmatpush.msra.mxu0 0.0
    %166 = vmatpush.msra.mxu0 0.0
    %167 = vmatpush.msra.mxu0 0.0
    %168 = vmatpush.msra.mxu0 0.0
    %169 = vmatpush.msra.mxu0 0.0
    %170 = vmatpush.msra.mxu0 0.0
    %171 = vmatpush.msra.mxu0 0.0
    %172 = vmatpush.msra.mxu0 0.0
    %173 = vmatpush.msra.mxu0 0.0
    %174 = vmatpush.msra.mxu0 %v161
    %175 = vmatpush.msra.mxu0 %v153
    %176 = vmatpush.msra.mxu0 %v152
    %177 = vmatpush.msra.mxu0 %v151
    %178 = vmatpush.msra.mxu0 %v150
    %179 = vmatmul.f32.gmra.mxu0 %v157
    %v180 = vpop.f32.mrf.mxu0
    %v181 = vadd.f32 0.0, %v180
    %182 = vdwg.mxu0
    %v183 = vld [vmem:[%s2] sm:$0xff]
    %v184 = vld [vmem:[%s3] sm:$0xff]
    %vm185 = vcmask 261120
    %v186 = vsel %vm185, %v181, 0.0
    %187 = vadd.xlane.f32.xlu0 %v186
    %v188 = vpop.xlane.xlu0 %187
    %v189 = vmul.f32 %v188, 0.03125
    %v190 = vsub.f32 %v181, %v189
    %v191 = vmul.f32 %v190, %v190
    %v192 = vsel %vm185, %v191, 0.0
    %193 = vadd.xlane.f32.xlu0 %v192
    %v194 = vpop.xlane.xlu0 %193
    %v195 = vmul.f32 %v194, 0.03125
    %v196 = vadd.f32 %v195, 1e-05
    %v197 = vrsqrt.pop %v196
    %v198 = vmul.f32 %v197, %v196
    %v199 = vmul.f32 %v198, %v197
    %v200 = vmul.f32 0.5, %v199
    %v201 = vsub.f32 1.5, %v200
    %v202 = vmul.f32 %v197, %v201
    %vm203 = vweird.f32 %v196
    %vm204 = vweird.f32 %v197
    %vm205 = vmor %vm203, %vm204
    %v206 = vsel %vm205, %v197, %v202
    %v207 = vmul.f32 %v183, %v206
    %v208 = vmul.f32 %v189, %v207
    %v209 = vsub.f32 %v184, %v208
    %211 = vset.pattern.permute.xlu0 0
    %212 = vperm.xlu0 %211, %v207
    %v213 = vpop.permute.xlu0 %212
    %v215 = vmul.f32 %v181, %v213
    %217 = vset.pattern.permute.xlu0 0
    %218 = vperm.xlu0 %217, %v209
    %v219 = vpop.permute.xlu0 %218
    %v221 = vadd.f32 %v215, %v219
    %v222 = vmax.f32 %v221, 0.0
    %v223 = vld [vmem:[%s4] sm:$0xff]
    %224 = vrot.lane.b32.xlu0 %v222, 32
    %v225 = vpop.permute.xlu0 %224
    %v226 = vsel %vm51, %v225, %v222
    %227 = vrot.lane.b32.xlu0 %v226, 32
    %v228 = vpop.permute.xlu0 %227
    %v229 = vsel %vm51, %v228, %v222
    %231 = vrot.lane.b32.xlu0 %v229, 100
    %v232 = vpop.permute.xlu0 %231
    %v234 = vsel %vm63, %v232, 0.0
    %s235 = scalar_lea.vmem %s4, 8
    %v236 = vld [vmem:[%s235] sm:$0xff]
    %237 = vrot.lane.b32.xlu0 %v229, 99
    %v238 = vpop.permute.xlu0 %237
    %v240 = vsel %vm76, %v238, 0.0
    %vm241 = vcmask 64512
    %v243 = vsel %vm241, %v236, 0
    %245 = vmatpush.msra.mxu0 0.0
    %246 = vmatpush.msra.mxu0 0.0
    %247 = vmatpush.msra.mxu0 0.0
    %248 = vmatpush.msra.mxu0 0.0
    %249 = vmatpush.msra.mxu0 0.0
    %250 = vmatpush.msra.mxu0 0.0
    %251 = vmatpush.msra.mxu0 0.0
    %252 = vmatpush.msra.mxu0 0.0
    %253 = vmatpush.msra.mxu0 0.0
    %254 = vmatpush.msra.mxu0 0.0
    %255 = vmatpush.msra.mxu0 0.0
    %256 = vmatpush.msra.mxu0 0.0
    %257 = vmatpush.msra.mxu0 0.0
    %258 = vmatpush.msra.mxu0 0.0
    %259 = vmatpush.msra.mxu0 0.0
    %260 = vmatpush.msra.mxu0 %v240
    %261 = vmatmul.f32.gmra.mxu0 %v243
    %v262 = vpop.f32.mrf.mxu0
    %v263 = vadd.f32 0.0, %v262
    %264 = vdwg.mxu0
    %v266 = vsel %vm241, %v223, 0
    %268 = vmatpush.msra.mxu0 0.0
    %269 = vmatpush.msra.mxu0 0.0
    %270 = vmatpush.msra.mxu0 0.0
    %271 = vmatpush.msra.mxu0 0.0
    %272 = vmatpush.msra.mxu0 0.0
    %273 = vmatpush.msra.mxu0 0.0
    %274 = vmatpush.msra.mxu0 0.0
    %275 = vmatpush.msra.mxu0 0.0
    %276 = vmatpush.msra.mxu0 0.0
    %277 = vmatpush.msra.mxu0 0.0
    %278 = vmatpush.msra.mxu0 0.0
    %279 = vmatpush.msra.mxu0 0.0
    %280 = vmatpush.msra.mxu0 0.0
    %281 = vmatpush.msra.mxu0 0.0
    %282 = vmatpush.msra.mxu0 0.0
    %283 = vmatpush.msra.mxu0 %v234
    %284 = vmatmul.f32.gmra.mxu0 %v266
    %v285 = vpop.f32.mrf.mxu0
    %v286 = vadd.f32 %v263, %v285
    %287 = vdwg.mxu0
    %s288 = scalar_lea.vmem %s4, 16
    %v289 = vld [vmem:[%s288] sm:$0xff]
    %290 = vrot.lane.b32.xlu0 %v229, 98
    %v291 = vpop.permute.xlu0 %290
    %v293 = vsel %vm87, %v291, 0.0
    %v295 = vsel %vm241, %v289, 0
    %297 = vmatpush.msra.mxu0 0.0
    %298 = vmatpush.msra.mxu0 0.0
    %299 = vmatpush.msra.mxu0 0.0
    %300 = vmatpush.msra.mxu0 0.0
    %301 = vmatpush.msra.mxu0 0.0
    %302 = vmatpush.msra.mxu0 0.0
    %303 = vmatpush.msra.mxu0 0.0
    %304 = vmatpush.msra.mxu0 0.0
    %305 = vmatpush.msra.mxu0 0.0
    %306 = vmatpush.msra.mxu0 0.0
    %307 = vmatpush.msra.mxu0 0.0
    %308 = vmatpush.msra.mxu0 0.0
    %309 = vmatpush.msra.mxu0 0.0
    %310 = vmatpush.msra.mxu0 0.0
    %311 = vmatpush.msra.mxu0 0.0
    %312 = vmatpush.msra.mxu0 %v293
    %313 = vmatmul.f32.gmra.mxu0 %v295
    %v314 = vpop.f32.mrf.mxu0
    %v315 = vadd.f32 0.0, %v314
    %316 = vdwg.mxu0
    %v317 = vadd.f32 %v286, %v315
    %s318 = scalar_lea.vmem %s4, 24
    %v319 = vld [vmem:[%s318] sm:$0xff]
    %320 = vrot.lane.b32.xlu0 %v229, 97
    %v321 = vpop.permute.xlu0 %320
    %v323 = vsel %vm98, %v321, 0.0
    %v325 = vsel %vm241, %v319, 0
    %327 = vmatpush.msra.mxu0 0.0
    %328 = vmatpush.msra.mxu0 0.0
    %329 = vmatpush.msra.mxu0 0.0
    %330 = vmatpush.msra.mxu0 0.0
    %331 = vmatpush.msra.mxu0 0.0
    %332 = vmatpush.msra.mxu0 0.0
    %333 = vmatpush.msra.mxu0 0.0
    %334 = vmatpush.msra.mxu0 0.0
    %335 = vmatpush.msra.mxu0 0.0
    %336 = vmatpush.msra.mxu0 0.0
    %337 = vmatpush.msra.mxu0 0.0
    %338 = vmatpush.msra.mxu0 0.0
    %339 = vmatpush.msra.mxu0 0.0
    %340 = vmatpush.msra.mxu0 0.0
    %341 = vmatpush.msra.mxu0 0.0
    %342 = vmatpush.msra.mxu0 %v323
    %343 = vmatmul.f32.gmra.mxu0 %v325
    %v344 = vpop.f32.mrf.mxu0
    %v345 = vadd.f32 0.0, %v344
    %346 = vdwg.mxu0
    %v347 = vadd.f32 %v317, %v345
    %s348 = scalar_lea.vmem %s4, 32
    %v349 = vld [vmem:[%s348] sm:$0xff]
    %v351 = vsel %vm241, %v349, 0
    %353 = vmatpush.msra.mxu0 0.0
    %354 = vmatpush.msra.mxu0 0.0
    %355 = vmatpush.msra.mxu0 0.0
    %356 = vmatpush.msra.mxu0 0.0
    %357 = vmatpush.msra.mxu0 0.0
    %358 = vmatpush.msra.mxu0 0.0
    %359 = vmatpush.msra.mxu0 0.0
    %360 = vmatpush.msra.mxu0 0.0
    %361 = vmatpush.msra.mxu0 0.0
    %362 = vmatpush.msra.mxu0 0.0
    %363 = vmatpush.msra.mxu0 0.0
    %364 = vmatpush.msra.mxu0 0.0
    %365 = vmatpush.msra.mxu0 0.0
    %366 = vmatpush.msra.mxu0 0.0
    %367 = vmatpush.msra.mxu0 0.0
    %368 = vmatpush.msra.mxu0 %v222
    %369 = vmatmul.f32.gmra.mxu0 %v351
    %v370 = vpop.f32.mrf.mxu0
    %v371 = vadd.f32 0.0, %v370
    %372 = vdwg.mxu0
    %v373 = vadd.f32 %v347, %v371
    %s374 = scalar_lea.vmem %s4, 40
    %v375 = vld [vmem:[%s374] sm:$0xff]
    %376 = vrot.lane.b32.xlu0 %v229, 127
    %v377 = vpop.permute.xlu0 %376
    %v379 = vsel %vm110, %v377, 0.0
    %v381 = vsel %vm241, %v375, 0
    %383 = vmatpush.msra.mxu0 0.0
    %384 = vmatpush.msra.mxu0 0.0
    %385 = vmatpush.msra.mxu0 0.0
    %386 = vmatpush.msra.mxu0 0.0
    %387 = vmatpush.msra.mxu0 0.0
    %388 = vmatpush.msra.mxu0 0.0
    %389 = vmatpush.msra.mxu0 0.0
    %390 = vmatpush.msra.mxu0 0.0
    %391 = vmatpush.msra.mxu0 0.0
    %392 = vmatpush.msra.mxu0 0.0
    %393 = vmatpush.msra.mxu0 0.0
    %394 = vmatpush.msra.mxu0 0.0
    %395 = vmatpush.msra.mxu0 0.0
    %396 = vmatpush.msra.mxu0 0.0
    %397 = vmatpush.msra.mxu0 0.0
    %398 = vmatpush.msra.mxu0 %v379
    %399 = vmatmul.f32.gmra.mxu0 %v381
    %v400 = vpop.f32.mrf.mxu0
    %v401 = vadd.f32 0.0, %v400
    %402 = vdwg.mxu0
    %v403 = vadd.f32 %v373, %v401
    %s404 = scalar_lea.vmem %s4, 48
    %v405 = vld [vmem:[%s404] sm:$0xff]
    %406 = vrot.lane.b32.xlu0 %v229, 126
    %v407 = vpop.permute.xlu0 %406
    %v409 = vsel %vm121, %v407, 0.0
    %v411 = vsel %vm241, %v405, 0
    %413 = vmatpush.msra.mxu0 0.0
    %414 = vmatpush.msra.mxu0 0.0
    %415 = vmatpush.msra.mxu0 0.0
    %416 = vmatpush.msra.mxu0 0.0
    %417 = vmatpush.msra.mxu0 0.0
    %418 = vmatpush.msra.mxu0 0.0
    %419 = vmatpush.msra.mxu0 0.0
    %420 = vmatpush.msra.mxu0 0.0
    %421 = vmatpush.msra.mxu0 0.0
    %422 = vmatpush.msra.mxu0 0.0
    %423 = vmatpush.msra.mxu0 0.0
    %424 = vmatpush.msra.mxu0 0.0
    %425 = vmatpush.msra.mxu0 0.0
    %426 = vmatpush.msra.mxu0 0.0
    %427 = vmatpush.msra.mxu0 0.0
    %428 = vmatpush.msra.mxu0 %v409
    %429 = vmatmul.f32.gmra.mxu0 %v411
    %v430 = vpop.f32.mrf.mxu0
    %v431 = vadd.f32 0.0, %v430
    %432 = vdwg.mxu0
    %v433 = vadd.f32 %v403, %v431
    %s434 = scalar_lea.vmem %s4, 56
    %v435 = vld [vmem:[%s434] sm:$0xff]
    %436 = vrot.lane.b32.xlu0 %v229, 125
    %v437 = vpop.permute.xlu0 %436
    %v439 = vsel %vm132, %v437, 0.0
    %v441 = vsel %vm241, %v435, 0
    %443 = vmatpush.msra.mxu0 0.0
    %444 = vmatpush.msra.mxu0 0.0
    %445 = vmatpush.msra.mxu0 0.0
    %446 = vmatpush.msra.mxu0 0.0
    %447 = vmatpush.msra.mxu0 0.0
    %448 = vmatpush.msra.mxu0 0.0
    %449 = vmatpush.msra.mxu0 0.0
    %450 = vmatpush.msra.mxu0 0.0
    %451 = vmatpush.msra.mxu0 0.0
    %452 = vmatpush.msra.mxu0 0.0
    %453 = vmatpush.msra.mxu0 0.0
    %454 = vmatpush.msra.mxu0 0.0
    %455 = vmatpush.msra.mxu0 0.0
    %456 = vmatpush.msra.mxu0 0.0
    %457 = vmatpush.msra.mxu0 0.0
    %458 = vmatpush.msra.mxu0 %v439
    %459 = vmatmul.f32.gmra.mxu0 %v441
    %v460 = vpop.f32.mrf.mxu0
    %v461 = vadd.f32 0.0, %v460
    %462 = vdwg.mxu0
    %v463 = vadd.f32 %v433, %v461
    %s464 = scalar_lea.vmem %s4, 64
    %v465 = vld [vmem:[%s464] sm:$0xff]
    %466 = vrot.lane.b32.xlu0 %v229, 124
    %v467 = vpop.permute.xlu0 %466
    %v469 = vsel %vm143, %v467, 0.0
    %v471 = vsel %vm241, %v465, 0
    %473 = vmatpush.msra.mxu0 0.0
    %474 = vmatpush.msra.mxu0 0.0
    %475 = vmatpush.msra.mxu0 0.0
    %476 = vmatpush.msra.mxu0 0.0
    %477 = vmatpush.msra.mxu0 0.0
    %478 = vmatpush.msra.mxu0 0.0
    %479 = vmatpush.msra.mxu0 0.0
    %480 = vmatpush.msra.mxu0 0.0
    %481 = vmatpush.msra.mxu0 0.0
    %482 = vmatpush.msra.mxu0 0.0
    %483 = vmatpush.msra.mxu0 0.0
    %484 = vmatpush.msra.mxu0 0.0
    %485 = vmatpush.msra.mxu0 0.0
    %486 = vmatpush.msra.mxu0 0.0
    %487 = vmatpush.msra.mxu0 0.0
    %488 = vmatpush.msra.mxu0 %v469
    %489 = vmatmul.f32.gmra.mxu0 %v471
    %v490 = vpop.f32.mrf.mxu0
    %v491 = vadd.f32 0.0, %v490
    %492 = vdwg.mxu0
    %v493 = vadd.f32 %v463, %v491
    %v494 = vld [vmem:[%s5] sm:$0xff]
    %v495 = vld [vmem:[%s6] sm:$0xff]
    %v496 = vsel %vm185, %v493, 0.0
    %497 = vadd.xlane.f32.xlu0 %v496
    %v498 = vpop.xlane.xlu0 %497
    %v499 = vmul.f32 %v498, 0.03125
    %v500 = vsub.f32 %v493, %v499
    %v501 = vmul.f32 %v500, %v500
    %v502 = vsel %vm185, %v501, 0.0
    %503 = vadd.xlane.f32.xlu0 %v502
    %v504 = vpop.xlane.xlu0 %503
    %v505 = vmul.f32 %v504, 0.03125
    %v506 = vadd.f32 %v505, 1e-05
    %v507 = vrsqrt.pop %v506
    %v508 = vmul.f32 %v507, %v506
    %v509 = vmul.f32 %v508, %v507
    %v510 = vmul.f32 0.5, %v509
    %v511 = vsub.f32 1.5, %v510
    %v512 = vmul.f32 %v507, %v511
    %vm513 = vweird.f32 %v506
    %vm514 = vweird.f32 %v507
    %vm515 = vmor %vm513, %vm514
    %v516 = vsel %vm515, %v507, %v512
    %v517 = vmul.f32 %v494, %v516
    %v518 = vmul.f32 %v499, %v517
    %v519 = vsub.f32 %v495, %v518
    %v520 = vld [vmem:[%s7] sm:$0xff]
    %vm521 = vcmask 31744
    %v523 = vsel %vm521, %v520, 0
    %v526 = vsel %vm159, %v50, 0
    %528 = vmatpush.msra.mxu0 0.0
    %529 = vmatpush.msra.mxu0 0.0
    %530 = vmatpush.msra.mxu0 0.0
    %531 = vmatpush.msra.mxu0 0.0
    %532 = vmatpush.msra.mxu0 0.0
    %533 = vmatpush.msra.mxu0 0.0
    %534 = vmatpush.msra.mxu0 0.0
    %535 = vmatpush.msra.mxu0 0.0
    %536 = vmatpush.msra.mxu0 0.0
    %537 = vmatpush.msra.mxu0 0.0
    %538 = vmatpush.msra.mxu0 0.0
    %539 = vmatpush.msra.mxu0 0.0
    %540 = vmatpush.msra.mxu0 0.0
    %541 = vmatpush.msra.mxu0 0.0
    %542 = vmatpush.msra.mxu0 0.0
    %543 = vmatpush.msra.mxu0 %v526
    %544 = vmatmul.f32.gmra.mxu0 %v523
    %v545 = vpop.f32.mrf.mxu0
    %v546 = vadd.f32 0.0, %v545
    %547 = vdwg.mxu0
    %v548 = vld [vmem:[%s8] sm:$0xff]
    %v549 = vld [vmem:[%s9] sm:$0xff]
    %v550 = vsel %vm185, %v546, 0.0
    %551 = vadd.xlane.f32.xlu0 %v550
    %v552 = vpop.xlane.xlu0 %551
    %v553 = vmul.f32 %v552, 0.03125
    %v554 = vsub.f32 %v546, %v553
    %v555 = vmul.f32 %v554, %v554
    %v556 = vsel %vm185, %v555, 0.0
    %557 = vadd.xlane.f32.xlu0 %v556
    %v558 = vpop.xlane.xlu0 %557
    %v559 = vmul.f32 %v558, 0.03125
    %v560 = vadd.f32 %v559, 1e-05
    %v561 = vrsqrt.pop %v560
    %v562 = vmul.f32 %v561, %v560
    %v563 = vmul.f32 %v562, %v561
    %v564 = vmul.f32 0.5, %v563
    %v565 = vsub.f32 1.5, %v564
    %v566 = vmul.f32 %v561, %v565
    %vm567 = vweird.f32 %v560
    %vm568 = vweird.f32 %v561
    %vm569 = vmor %vm567, %vm568
    %v570 = vsel %vm569, %v561, %v566
    %v571 = vmul.f32 %v548, %v570
    %v572 = vmul.f32 %v553, %v571
    %v573 = vsub.f32 %v549, %v572
    %575 = vset.pattern.permute.xlu0 0
    %576 = vperm.xlu0 %575, %v571
    %v577 = vpop.permute.xlu0 %576
    %v579 = vmul.f32 %v546, %v577
    %v580 = vadd.f32 %v519, %v573
    %582 = vset.pattern.permute.xlu0 0
    %583 = vperm.xlu0 %582, %v517
    %v584 = vpop.permute.xlu0 %583
    %v586 = vmul.f32 %v493, %v584
    %v587 = vadd.f32 %v586, %v579
    %589 = vset.pattern.permute.xlu0 0
    %590 = vperm.xlu0 %589, %v580
    %v591 = vpop.permute.xlu0 %590
    %v593 = vadd.f32 %v587, %v591
    %v594 = vmax.f32 %v593, 0.0
    %595 = vst.msk [vmem:[#allocation3] sm:$0xff] %vm185, %v594
    // Predicated region
    $region42: #{tpu_custom_call.1} parent=1 // pred_check
      _
    $region43: #{tpu_custom_call.1} parent=1 // pred_check_branch
      %597 = sbr.rel (0) target = $region45
    $region44: #{tpu_custom_call.1} parent=1 // pred_region
      %599 = vsyncadd [#allocation4], 0
      %s601 = sshll.u32 [#allocation3], 4
      %s602 = int_to_ptr.vmem [resolvable:$true] %s601
      %s603 = sshll.u32 %s10, 4
      %s604 = int_to_ptr.hbm [resolvable:$true] %s603
      %606 = dma.vmem_to_hbm [thread:$0]  %s602, 128, %s604, [#allocation4]
    $region45: #{tpu_custom_call.1} parent=1 // pred_fallthru
      _
    // Predicated region
    $region46: #{tpu_custom_call.1} parent=1 // pred_check
      _
    $region47: #{tpu_custom_call.1} parent=1 // pred_check_branch
      %608 = sbr.rel (0) target = $region49
    $region48: #{tpu_custom_call.1} parent=1 // pred_region
      %610 = dma.done [#allocation4], 128
    $region49: #{tpu_custom_call.1} parent=1 // pred_fallthru
      _
    %611 = vsyncpa [#allocation4], 1

</llo_original>
